<compile_context>
chip_gen: v7x
topology: tpu7x:2x2x1
jax: 0.10.0
libtpu: 0.0.40
codegen_flags: <defaults>
</compile_context>

<pallas_src>
import functools
import math

import jax
import jax.numpy as jnp
from jax.experimental import pallas as pl
from jax.experimental.pallas import tpu as pltpu

LANES = 128


def _round_up(x, m):
    return (x + m - 1) // m * m


def _combined_loss_kernel(pred_ref, tgt_ref,
                          inter_ref, union_ref, cesum_ref, cecnt_ref,
                          *, C, TR, S, n_steps, n_blocks, has_tail,
                          needs_oob_guard, ignore_index):
    g = pl.program_id(1)
    s = pl.program_id(2)
    blk = g * n_steps + s        # logical row-block index (can exceed n_blocks-1)

    @pl.when(s == 0)
    def _():
        inter_ref[...] = jnp.zeros_like(inter_ref)
        union_ref[...] = jnp.zeros_like(union_ref)
        cesum_ref[...] = jnp.zeros_like(cesum_ref)
        cecnt_ref[...] = jnp.zeros_like(cecnt_ref)

    tgt = tgt_ref[0].astype(jnp.int32)                       # (TR, 128)

    def accumulate(masked):
        if masked:
            row = jax.lax.broadcasted_iota(jnp.int32, (TR, LANES), 0)
            lane = jax.lax.broadcasted_iota(jnp.int32, (TR, LANES), 1)
            pix = (blk * TR + row) * LANES + lane
            in_b = pix < S
            pm = in_b.astype(jnp.float32)

        def load_cls(c):
            lc = pred_ref[0, c].astype(jnp.float32)           # (TR, 128)
            if masked:
                # Mask BEFORE max/exp: the partial tail block can hold stale
                # VMEM garbage and NaN * 0 == NaN.
                lc = jnp.where(in_b, lc, 0.0)
            return lc

        # ---- pass 1: per-pixel max over classes (pure elementwise across
        # the C leading slabs; no cross-lane work) ----
        m = load_cls(0)
        for c in range(1, C):
            m = jnp.maximum(m, load_cls(c))

        # ---- pass 2: exp / softmax denominator / selected-target logit ----
        denom = jnp.zeros((TR, LANES), jnp.float32)
        sel = jnp.zeros((TR, LANES), jnp.float32)
        exs = []
        for c in range(C):
            lc = load_cls(c)
            e = jnp.exp(lc - m)
            exs.append(e)
            denom = denom + e
            sel = sel + jnp.where(tgt == c, lc, 0.0)

        inv = pl.reciprocal(denom)      # EUP; exact to keep 1e-5 parity

        # ---- cross-entropy partial sums (ignore_index) ----
        valid = (tgt != ignore_index).astype(jnp.float32)
        if masked:
            valid = valid * pm
        nll = (jnp.log(denom) + m) - sel                     # -log p[target]
        cesum_ref[0, 0] += jnp.sum(nll * valid, axis=0, keepdims=True)
        cecnt_ref[0, 0] += jnp.sum(valid, axis=0, keepdims=True)

        # ---- dice partial sums per class (lane-dense (C, 128) accumulators) ----
        inter_rows = []
        union_rows = []
        for c in range(C):
            p = exs[c] * inv
            if masked:
                p = p * pm
            hit = tgt == c
            inter_rows.append(
                jnp.sum(jnp.where(hit, p, 0.0), axis=0, keepdims=True))
            cnt = jnp.where(hit, pm, 0.0) if masked else hit.astype(jnp.float32)
            union_rows.append(jnp.sum(p, axis=0, keepdims=True)
                              + jnp.sum(cnt, axis=0, keepdims=True))
        inter_ref[0, 0] += jnp.concatenate(inter_rows, axis=0)   # (C, 128)
        union_ref[0, 0] += jnp.concatenate(union_rows, axis=0)   # (C, 128)

    tail = n_blocks - 1
    if not has_tail:
        if needs_oob_guard:
            @pl.when(blk < n_blocks)
            def _():
                accumulate(False)
        else:
            accumulate(False)
    elif n_blocks == 1:
        # Single (tail) block; G==1 in this case so no OOB steps are possible.
        accumulate(True)
    else:
        # Fast unmasked path for all full blocks; masked path only on the one
        # partial tail block.  OOB logical blocks (blk > tail) do nothing.
        @pl.when(blk < tail)
        def _():
            accumulate(False)

        @pl.when(blk == tail)
        def _():
            accumulate(True)


@functools.partial(jax.jit,
                   static_argnames=("alpha", "eps", "ignore_index", "tr_target"))
def combined_loss(pred, target, *, alpha=0.5, eps=1e-6, ignore_index=0,
                  tr_target=1024):
    """pred: (N, C, D, H, W) float32/bf16; target: (N, D, H, W) integer."""
    N, C = pred.shape[:2]
    S = int(math.prod(pred.shape[2:]))

    rows = pl.cdiv(S, LANES)
    rows_alloc = max(rows, 8)            # need at least 8 sublane rows
    S_alloc = rows_alloc * LANES

    # Megacore split: decide G first, then derive the tile from rows/G so both
    # v7x TensorCores get work even with large tiles (G is a no-op on 1-TC chips).
    G = 2 if (N == 1 and rows_alloc >= 16) else 1

    # Tile rows: as large as VMEM comfortably allows (double-buffered input
    # block + in-kernel f32 slabs), multiple of 8 sublanes.
    per_row_bytes = LANES * 4 * (3 * C + 8)
    tr_cap = max(8, (40 * 1024 * 1024 // per_row_bytes) // 8 * 8)
    TR = max(8, min(_round_up(tr_target, 8), tr_cap,
                    _round_up(pl.cdiv(rows_alloc, G), 8)))

    n_blocks = pl.cdiv(rows_alloc, TR)
    n_steps = pl.cdiv(n_blocks, G)
    has_tail = (n_blocks * TR * LANES) != S
    needs_oob_guard = (G * n_steps) > n_blocks

    pred3 = pred.reshape(N, C, S)
    tgt2 = target.reshape(N, S)
    if S_alloc != S:
        # TODO(synk): this pad copies the array; it only triggers when
        # S % 128 != 0 (or S < 1024) — rare for realistic volumes.
        pred3 = jnp.pad(pred3, ((0, 0), (0, 0), (0, S_alloc - S)))
        tgt2 = jnp.pad(tgt2, ((0, 0), (0, S_alloc - S)))
    pred4 = pred3.reshape(N, C, rows_alloc, LANES)     # free view when no pad
    tgt3 = tgt2.reshape(N, rows_alloc, LANES)

    if needs_oob_guard:
        def row_block(n, g, s):
            return jnp.minimum(g * n_steps + s, n_blocks - 1)
    else:
        def row_block(n, g, s):
            return g * n_steps + s

    kernel = functools.partial(
        _combined_loss_kernel, C=C, TR=TR, S=S, n_steps=n_steps,
        n_blocks=n_blocks, has_tail=has_tail,
        needs_oob_guard=needs_oob_guard, ignore_index=ignore_index)

    inter, union, cesum, cecnt = pl.pallas_call(
        kernel,
        out_shape=(
            jax.ShapeDtypeStruct((N, G, C, LANES), jnp.float32),  # intersection
            jax.ShapeDtypeStruct((N, G, C, LANES), jnp.float32),  # union
            jax.ShapeDtypeStruct((N, G, 1, LANES), jnp.float32),  # CE nll sum
            jax.ShapeDtypeStruct((N, G, 1, LANES), jnp.float32),  # CE valid cnt
        ),
        grid_spec=pltpu.PrefetchScalarGridSpec(
            num_scalar_prefetch=0,
            grid=(N, G, n_steps),
            in_specs=[
                pl.BlockSpec((1, C, TR, LANES),
                             lambda n, g, s: (n, 0, row_block(n, g, s), 0)),
                pl.BlockSpec((1, TR, LANES),
                             lambda n, g, s: (n, row_block(n, g, s), 0)),
            ],
            out_specs=[
                pl.BlockSpec((1, 1, C, LANES), lambda n, g, s: (n, g, 0, 0)),
                pl.BlockSpec((1, 1, C, LANES), lambda n, g, s: (n, g, 0, 0)),
                pl.BlockSpec((1, 1, 1, LANES), lambda n, g, s: (n, g, 0, 0)),
                pl.BlockSpec((1, 1, 1, LANES), lambda n, g, s: (n, g, 0, 0)),
            ],
        ),
        compiler_params=pltpu.CompilerParams(
            dimension_semantics=("parallel", "parallel", "arbitrary"),
            vmem_limit_bytes=48 * 1024 * 1024),
    )(pred4, tgt3)

    # final scalar combination (tiny JAX glue)
    ce = jnp.sum(cesum) / jnp.sum(cecnt)
    inter_nc = jnp.sum(inter, axis=(1, 3))       # (N, C)
    union_nc = jnp.sum(union, axis=(1, 3))       # (N, C)
    dice = 1.0 - jnp.mean((2.0 * inter_nc + eps) / (union_nc + eps))
    return alpha * ce + (1.0 - alpha) * dice


def reference_loss(pred, target, alpha=0.5, eps=1e-6, ignore_index=0):
    """Pure-JAX reference mirroring the PyTorch module."""
    C = pred.shape[1]
    logp = jax.nn.log_softmax(pred, axis=1)
    nll = -jnp.take_along_axis(logp, target[:, None].astype(jnp.int32),
                               axis=1)[:, 0]
    valid = (target != ignore_index).astype(jnp.float32)
    ce = jnp.sum(nll * valid) / jnp.sum(valid)

    probs = jax.nn.softmax(pred, axis=1)
    oh = jax.nn.one_hot(target, C, dtype=jnp.float32)        # (N,D,H,W,C)
    oh = jnp.moveaxis(oh, -1, 1)                              # (N,C,D,H,W)
    inter = jnp.sum(probs * oh, axis=(2, 3, 4))
    union = jnp.sum(probs, axis=(2, 3, 4)) + jnp.sum(oh, axis=(2, 3, 4))
    dice = 1.0 - jnp.mean((2.0 * inter + eps) / (union + eps))
    return alpha * ce + (1.0 - alpha) * dice


if __name__ == "__main__":
    key = jax.random.PRNGKey(0)

    def make_case(k, shape, num_classes, dtype):
        k1, k2 = jax.random.split(k)
        N, D, H, W = shape
        pred = jax.random.normal(k1, (N, num_classes, D, H, W), jnp.float32)
        target = jax.random.randint(k2, (N, D, H, W), 0, num_classes,
                                    dtype=jnp.int32)
        return pred.astype(dtype), target

    cases = [
        # ((N, D, H, W), C, pred dtype, tr_target)
        ((2, 4, 8, 8),   4, jnp.float32, 1024),   # tiny: padded to 8 rows, masked
        ((1, 8, 32, 32), 4, jnp.float32, 1024),   # N=1 -> G=2 megacore split
        ((1, 8, 32, 32), 4, jnp.bfloat16, 1024),  # bf16 logits (half HBM stream)
        ((1, 3, 32, 32), 4, jnp.float32, 8),      # odd n_blocks -> OOB-guard path
        ((1, 5, 24, 32), 4, jnp.float32, 8),      # multi-step + partial tail block
        ((2, 3, 5, 7),   3, jnp.float32, 1024),   # S % 128 != 0 remainder pad
    ]
    keys = jax.random.split(key, len(cases))
    for (shape, C, dt, trt), k in zip(cases, keys):
        pred, target = make_case(k, shape, C, dt)
        loss = combined_loss(pred, target, tr_target=trt)
        jax.block_until_ready(loss)
        ref = reference_loss(pred.astype(jnp.float32), target)
        assert jnp.allclose(loss, ref, atol=3e-5, rtol=3e-5), (shape, dt, loss, ref)

    print("KERNEL_OK")
</pallas_src>

<mosaic_0001>
module attributes {stable_mosaic.version = 11 : i64} {
  func.func @_combined_loss_kernel(%arg0: i32, %arg1: i32, %arg2: i32, %arg3: memref<1x4x8x128xf32, #tpu.memory_space<vmem>>, %arg4: memref<1x8x128xi32, #tpu.memory_space<vmem>>, %arg5: memref<1x1x4x128xf32, #tpu.memory_space<vmem>>, %arg6: memref<1x1x4x128xf32, #tpu.memory_space<vmem>>, %arg7: memref<1x1x1x128xf32, #tpu.memory_space<vmem>>, %arg8: memref<1x1x1x128xf32, #tpu.memory_space<vmem>>) attributes {dimension_semantics = [#tpu.dimension_semantics<parallel>, #tpu.dimension_semantics<parallel>, #tpu.dimension_semantics<arbitrary>], iteration_bounds = array<i64: 2, 1, 1>, scalar_prefetch = 0 : i64, scratch_operands = 0 : i64, tpu.core_type = #tpu.core_type<tc>, window_params = [{transform_indices = @transform_0, window_bounds = array<i64: 1, 4, 8, 128>}, {transform_indices = @transform_1, window_bounds = array<i64: 1, 8, 128>}, {transform_indices = @transform_2, window_bounds = array<i64: 1, 1, 4, 128>}, {transform_indices = @transform_3, window_bounds = array<i64: 1, 1, 4, 128>}, {transform_indices = @transform_4, window_bounds = array<i64: 1, 1, 1, 128>}, {transform_indices = @transform_5, window_bounds = array<i64: 1, 1, 1, 128>}]} {
    %c1_i32 = arith.constant 1 : i32
    %0 = arith.muli %arg1, %c1_i32 : i32
    %1 = arith.addi %0, %arg2 : i32
    %c0_i32 = arith.constant 0 : i32
    %2 = arith.cmpi eq, %arg2, %c0_i32 : i32
    %3 = arith.extui %2 : i1 to i32
    %c0_i32_0 = arith.constant 0 : i32
    %4 = arith.cmpi ne, %3, %c0_i32_0 : i32
    scf.if %4 {
      %cst_106 = arith.constant 0.000000e+00 : f32
      %188 = vector.broadcast %cst_106 : f32 to vector<1x1x4x128xf32>
      %c0_107 = arith.constant 0 : index
      %c0_108 = arith.constant 0 : index
      %c0_109 = arith.constant 0 : index
      %c0_110 = arith.constant 0 : index
      %189 = vector.load %arg5[%c0_107, %c0_108, %c0_109, %c0_110] : memref<1x1x4x128xf32, #tpu.memory_space<vmem>>, vector<1x1x4x128xf32>
      tpu.vector_store %arg5[%c0_107, %c0_108, %c0_109, %c0_110], %188 {strides = array<i32>} : memref<1x1x4x128xf32, #tpu.memory_space<vmem>>, vector<1x1x4x128xf32>,
      %cst_111 = arith.constant 0.000000e+00 : f32
      %190 = vector.broadcast %cst_111 : f32 to vector<1x1x4x128xf32>
      %c0_112 = arith.constant 0 : index
      %c0_113 = arith.constant 0 : index
      %c0_114 = arith.constant 0 : index
      %c0_115 = arith.constant 0 : index
      %191 = vector.load %arg6[%c0_112, %c0_113, %c0_114, %c0_115] : memref<1x1x4x128xf32, #tpu.memory_space<vmem>>, vector<1x1x4x128xf32>
      tpu.vector_store %arg6[%c0_112, %c0_113, %c0_114, %c0_115], %190 {strides = array<i32>} : memref<1x1x4x128xf32, #tpu.memory_space<vmem>>, vector<1x1x4x128xf32>,
      %cst_116 = arith.constant 0.000000e+00 : f32
      %192 = vector.broadcast %cst_116 : f32 to vector<1x1x1x128xf32>
      %c0_117 = arith.constant 0 : index
      %c0_118 = arith.constant 0 : index
      %c0_119 = arith.constant 0 : index
      %c0_120 = arith.constant 0 : index
      %193 = vector.load %arg7[%c0_117, %c0_118, %c0_119, %c0_120] : memref<1x1x1x128xf32, #tpu.memory_space<vmem>>, vector<1x1x1x128xf32>
      tpu.vector_store %arg7[%c0_117, %c0_118, %c0_119, %c0_120], %192 {strides = array<i32>} : memref<1x1x1x128xf32, #tpu.memory_space<vmem>>, vector<1x1x1x128xf32>,
      %cst_121 = arith.constant 0.000000e+00 : f32
      %194 = vector.broadcast %cst_121 : f32 to vector<1x1x1x128xf32>
      %c0_122 = arith.constant 0 : index
      %c0_123 = arith.constant 0 : index
      %c0_124 = arith.constant 0 : index
      %c0_125 = arith.constant 0 : index
      %195 = vector.load %arg8[%c0_122, %c0_123, %c0_124, %c0_125] : memref<1x1x1x128xf32, #tpu.memory_space<vmem>>, vector<1x1x1x128xf32>
      tpu.vector_store %arg8[%c0_122, %c0_123, %c0_124, %c0_125], %194 {strides = array<i32>} : memref<1x1x1x128xf32, #tpu.memory_space<vmem>>, vector<1x1x1x128xf32>,
    } else {
    }
    %c0 = arith.constant 0 : index
    %c0_1 = arith.constant 0 : index
    %c0_2 = arith.constant 0 : index
    %5 = vector.load %arg4[%c0, %c0_1, %c0_2] : memref<1x8x128xi32, #tpu.memory_space<vmem>>, vector<1x8x128xi32>
    %6 = vector.shape_cast %5 : vector<1x8x128xi32> to vector<8x128xi32>
    %7 = tpu.iota {dimensions = array<i32: 0>} : vector<8x128xi32>
    %8 = tpu.iota {dimensions = array<i32: 1>} : vector<8x128xi32>
    %c8_i32 = arith.constant 8 : i32
    %9 = arith.muli %1, %c8_i32 : i32
    %10 = vector.broadcast %9 : i32 to vector<8x128xi32>
    %11 = arith.addi %10, %7 : vector<8x128xi32>
    %c128_i32 = arith.constant 128 : i32
    %12 = vector.broadcast %c128_i32 : i32 to vector<8x128xi32>
    %13 = arith.muli %11, %12 : vector<8x128xi32>
    %14 = arith.addi %13, %8 : vector<8x128xi32>
    %c256_i32 = arith.constant 256 : i32
    %15 = vector.broadcast %c256_i32 : i32 to vector<8x128xi32>
    %16 = arith.cmpi slt, %14, %15 : vector<8x128xi32>
    %17 = arith.extui %16 : vector<8x128xi1> to vector<8x128xi32>
    %18 = arith.sitofp %17 : vector<8x128xi32> to vector<8x128xf32>
    %c0_3 = arith.constant 0 : index
    %c0_4 = arith.constant 0 : index
    %c0_5 = arith.constant 0 : index
    %c0_6 = arith.constant 0 : index
    %19 = vector.load %arg3[%c0_3, %c0_4, %c0_5, %c0_6] : memref<1x4x8x128xf32, #tpu.memory_space<vmem>>, vector<1x1x8x128xf32>
    %20 = vector.shape_cast %19 : vector<1x1x8x128xf32> to vector<8x128xf32>
    %cst = arith.constant 0.000000e+00 : f32
    %21 = vector.broadcast %cst : f32 to vector<8x128xf32>
    %22 = arith.select %16, %20, %21 : vector<8x128xi1>, vector<8x128xf32>
    %c0_7 = arith.constant 0 : index
    %c1 = arith.constant 1 : index
    %c0_8 = arith.constant 0 : index
    %c0_9 = arith.constant 0 : index
    %23 = vector.load %arg3[%c0_7, %c1, %c0_8, %c0_9] : memref<1x4x8x128xf32, #tpu.memory_space<vmem>>, vector<1x1x8x128xf32>
    %24 = vector.shape_cast %23 : vector<1x1x8x128xf32> to vector<8x128xf32>
    %cst_10 = arith.constant 0.000000e+00 : f32
    %25 = vector.broadcast %cst_10 : f32 to vector<8x128xf32>
    %26 = arith.select %16, %24, %25 : vector<8x128xi1>, vector<8x128xf32>
    %27 = arith.maximumf %22, %26 : vector<8x128xf32>
    %c0_11 = arith.constant 0 : index
    %c2 = arith.constant 2 : index
    %c0_12 = arith.constant 0 : index
    %c0_13 = arith.constant 0 : index
    %28 = vector.load %arg3[%c0_11, %c2, %c0_12, %c0_13] : memref<1x4x8x128xf32, #tpu.memory_space<vmem>>, vector<1x1x8x128xf32>
    %29 = vector.shape_cast %28 : vector<1x1x8x128xf32> to vector<8x128xf32>
    %cst_14 = arith.constant 0.000000e+00 : f32
    %30 = vector.broadcast %cst_14 : f32 to vector<8x128xf32>
    %31 = arith.select %16, %29, %30 : vector<8x128xi1>, vector<8x128xf32>
    %32 = arith.maximumf %27, %31 : vector<8x128xf32>
    %c0_15 = arith.constant 0 : index
    %c3 = arith.constant 3 : index
    %c0_16 = arith.constant 0 : index
    %c0_17 = arith.constant 0 : index
    %33 = vector.load %arg3[%c0_15, %c3, %c0_16, %c0_17] : memref<1x4x8x128xf32, #tpu.memory_space<vmem>>, vector<1x1x8x128xf32>
    %34 = vector.shape_cast %33 : vector<1x1x8x128xf32> to vector<8x128xf32>
    %cst_18 = arith.constant 0.000000e+00 : f32
    %35 = vector.broadcast %cst_18 : f32 to vector<8x128xf32>
    %36 = arith.select %16, %34, %35 : vector<8x128xi1>, vector<8x128xf32>
    %37 = arith.maximumf %32, %36 : vector<8x128xf32>
    %cst_19 = arith.constant 0.000000e+00 : f32
    %38 = vector.broadcast %cst_19 : f32 to vector<8x128xf32>
    %cst_20 = arith.constant 0.000000e+00 : f32
    %39 = vector.broadcast %cst_20 : f32 to vector<8x128xf32>
    %c0_21 = arith.constant 0 : index
    %c0_22 = arith.constant 0 : index
    %c0_23 = arith.constant 0 : index
    %c0_24 = arith.constant 0 : index
    %40 = vector.load %arg3[%c0_21, %c0_22, %c0_23, %c0_24] : memref<1x4x8x128xf32, #tpu.memory_space<vmem>>, vector<1x1x8x128xf32>
    %41 = vector.shape_cast %40 : vector<1x1x8x128xf32> to vector<8x128xf32>
    %cst_25 = arith.constant 0.000000e+00 : f32
    %42 = vector.broadcast %cst_25 : f32 to vector<8x128xf32>
    %43 = arith.select %16, %41, %42 : vector<8x128xi1>, vector<8x128xf32>
    %44 = arith.subf %43, %37 : vector<8x128xf32>
    %45 = math.exp %44 : vector<8x128xf32>
    %46 = arith.addf %38, %45 : vector<8x128xf32>
    %c0_i32_26 = arith.constant 0 : i32
    %47 = vector.broadcast %c0_i32_26 : i32 to vector<8x128xi32>
    %48 = arith.cmpi eq, %6, %47 : vector<8x128xi32>
    %cst_27 = arith.constant 0.000000e+00 : f32
    %49 = vector.broadcast %cst_27 : f32 to vector<8x128xf32>
    %50 = arith.select %48, %43, %49 : vector<8x128xi1>, vector<8x128xf32>
    %51 = arith.addf %39, %50 : vector<8x128xf32>
    %c0_28 = arith.constant 0 : index
    %c1_29 = arith.constant 1 : index
    %c0_30 = arith.constant 0 : index
    %c0_31 = arith.constant 0 : index
    %52 = vector.load %arg3[%c0_28, %c1_29, %c0_30, %c0_31] : memref<1x4x8x128xf32, #tpu.memory_space<vmem>>, vector<1x1x8x128xf32>
    %53 = vector.shape_cast %52 : vector<1x1x8x128xf32> to vector<8x128xf32>
    %cst_32 = arith.constant 0.000000e+00 : f32
    %54 = vector.broadcast %cst_32 : f32 to vector<8x128xf32>
    %55 = arith.select %16, %53, %54 : vector<8x128xi1>, vector<8x128xf32>
    %56 = arith.subf %55, %37 : vector<8x128xf32>
    %57 = math.exp %56 : vector<8x128xf32>
    %58 = arith.addf %46, %57 : vector<8x128xf32>
    %c1_i32_33 = arith.constant 1 : i32
    %59 = vector.broadcast %c1_i32_33 : i32 to vector<8x128xi32>
    %60 = arith.cmpi eq, %6, %59 : vector<8x128xi32>
    %cst_34 = arith.constant 0.000000e+00 : f32
    %61 = vector.broadcast %cst_34 : f32 to vector<8x128xf32>
    %62 = arith.select %60, %55, %61 : vector<8x128xi1>, vector<8x128xf32>
    %63 = arith.addf %51, %62 : vector<8x128xf32>
    %c0_35 = arith.constant 0 : index
    %c2_36 = arith.constant 2 : index
    %c0_37 = arith.constant 0 : index
    %c0_38 = arith.constant 0 : index
    %64 = vector.load %arg3[%c0_35, %c2_36, %c0_37, %c0_38] : memref<1x4x8x128xf32, #tpu.memory_space<vmem>>, vector<1x1x8x128xf32>
    %65 = vector.shape_cast %64 : vector<1x1x8x128xf32> to vector<8x128xf32>
    %cst_39 = arith.constant 0.000000e+00 : f32
    %66 = vector.broadcast %cst_39 : f32 to vector<8x128xf32>
    %67 = arith.select %16, %65, %66 : vector<8x128xi1>, vector<8x128xf32>
    %68 = arith.subf %67, %37 : vector<8x128xf32>
    %69 = math.exp %68 : vector<8x128xf32>
    %70 = arith.addf %58, %69 : vector<8x128xf32>
    %c2_i32 = arith.constant 2 : i32
    %71 = vector.broadcast %c2_i32 : i32 to vector<8x128xi32>
    %72 = arith.cmpi eq, %6, %71 : vector<8x128xi32>
    %cst_40 = arith.constant 0.000000e+00 : f32
    %73 = vector.broadcast %cst_40 : f32 to vector<8x128xf32>
    %74 = arith.select %72, %67, %73 : vector<8x128xi1>, vector<8x128xf32>
    %75 = arith.addf %63, %74 : vector<8x128xf32>
    %c0_41 = arith.constant 0 : index
    %c3_42 = arith.constant 3 : index
    %c0_43 = arith.constant 0 : index
    %c0_44 = arith.constant 0 : index
    %76 = vector.load %arg3[%c0_41, %c3_42, %c0_43, %c0_44] : memref<1x4x8x128xf32, #tpu.memory_space<vmem>>, vector<1x1x8x128xf32>
    %77 = vector.shape_cast %76 : vector<1x1x8x128xf32> to vector<8x128xf32>
    %cst_45 = arith.constant 0.000000e+00 : f32
    %78 = vector.broadcast %cst_45 : f32 to vector<8x128xf32>
    %79 = arith.select %16, %77, %78 : vector<8x128xi1>, vector<8x128xf32>
    %80 = arith.subf %79, %37 : vector<8x128xf32>
    %81 = math.exp %80 : vector<8x128xf32>
    %82 = arith.addf %70, %81 : vector<8x128xf32>
    %c3_i32 = arith.constant 3 : i32
    %83 = vector.broadcast %c3_i32 : i32 to vector<8x128xi32>
    %84 = arith.cmpi eq, %6, %83 : vector<8x128xi32>
    %cst_46 = arith.constant 0.000000e+00 : f32
    %85 = vector.broadcast %cst_46 : f32 to vector<8x128xf32>
    %86 = arith.select %84, %79, %85 : vector<8x128xi1>, vector<8x128xf32>
    %87 = arith.addf %75, %86 : vector<8x128xf32>
    %88 = tpu.reciprocal %82 : vector<8x128xf32> -> vector<8x128xf32>
    %c0_i32_47 = arith.constant 0 : i32
    %89 = vector.broadcast %c0_i32_47 : i32 to vector<8x128xi32>
    %90 = arith.cmpi ne, %6, %89 : vector<8x128xi32>
    %91 = arith.extui %90 : vector<8x128xi1> to vector<8x128xi32>
    %92 = arith.sitofp %91 : vector<8x128xi32> to vector<8x128xf32>
    %93 = arith.mulf %92, %18 : vector<8x128xf32>
    %94 = math.log %82 : vector<8x128xf32>
    %95 = arith.addf %94, %37 : vector<8x128xf32>
    %96 = arith.subf %95, %87 : vector<8x128xf32>
    %c0_48 = arith.constant 0 : index
    %c0_49 = arith.constant 0 : index
    %c0_50 = arith.constant 0 : index
    %c0_51 = arith.constant 0 : index
    %97 = vector.load %arg7[%c0_48, %c0_49, %c0_50, %c0_51] : memref<1x1x1x128xf32, #tpu.memory_space<vmem>>, vector<1x1x1x128xf32>
    %98 = vector.shape_cast %97 : vector<1x1x1x128xf32> to vector<1x128xf32>
    %99 = arith.mulf %96, %93 : vector<8x128xf32>
    %cst_52 = arith.constant dense<0.000000e+00> : vector<128xf32>
    %100 = vector.multi_reduction <add>, %99, %cst_52 [0] : vector<8x128xf32> to vector<128xf32>
    %101 = vector.shape_cast %100 : vector<128xf32> to vector<1x128xf32>
    %102 = arith.addf %98, %101 : vector<1x128xf32>
    %c0_53 = arith.constant 0 : index
    %c0_54 = arith.constant 0 : index
    %c0_55 = arith.constant 0 : index
    %c0_56 = arith.constant 0 : index
    %103 = vector.load %arg7[%c0_53, %c0_54, %c0_55, %c0_56] : memref<1x1x1x128xf32, #tpu.memory_space<vmem>>, vector<1x1x1x128xf32>
    %104 = vector.shape_cast %103 : vector<1x1x1x128xf32> to vector<1x128xf32>
    %105 = vector.shape_cast %102 : vector<1x128xf32> to vector<1x1x1x128xf32>
    tpu.vector_store %arg7[%c0_53, %c0_54, %c0_55, %c0_56], %105 {strides = array<i32>} : memref<1x1x1x128xf32, #tpu.memory_space<vmem>>, vector<1x1x1x128xf32>,
    %c0_57 = arith.constant 0 : index
    %c0_58 = arith.constant 0 : index
    %c0_59 = arith.constant 0 : index
    %c0_60 = arith.constant 0 : index
    %106 = vector.load %arg8[%c0_57, %c0_58, %c0_59, %c0_60] : memref<1x1x1x128xf32, #tpu.memory_space<vmem>>, vector<1x1x1x128xf32>
    %107 = vector.shape_cast %106 : vector<1x1x1x128xf32> to vector<1x128xf32>
    %cst_61 = arith.constant dense<0.000000e+00> : vector<128xf32>
    %108 = vector.multi_reduction <add>, %93, %cst_61 [0] : vector<8x128xf32> to vector<128xf32>
    %109 = vector.shape_cast %108 : vector<128xf32> to vector<1x128xf32>
    %110 = arith.addf %107, %109 : vector<1x128xf32>
    %c0_62 = arith.constant 0 : index
    %c0_63 = arith.constant 0 : index
    %c0_64 = arith.constant 0 : index
    %c0_65 = arith.constant 0 : index
    %111 = vector.load %arg8[%c0_62, %c0_63, %c0_64, %c0_65] : memref<1x1x1x128xf32, #tpu.memory_space<vmem>>, vector<1x1x1x128xf32>
    %112 = vector.shape_cast %111 : vector<1x1x1x128xf32> to vector<1x128xf32>
    %113 = vector.shape_cast %110 : vector<1x128xf32> to vector<1x1x1x128xf32>
    tpu.vector_store %arg8[%c0_62, %c0_63, %c0_64, %c0_65], %113 {strides = array<i32>} : memref<1x1x1x128xf32, #tpu.memory_space<vmem>>, vector<1x1x1x128xf32>,
    %114 = arith.mulf %45, %88 : vector<8x128xf32>
    %115 = arith.mulf %114, %18 : vector<8x128xf32>
    %c0_i32_66 = arith.constant 0 : i32
    %116 = vector.broadcast %c0_i32_66 : i32 to vector<8x128xi32>
    %117 = arith.cmpi eq, %6, %116 : vector<8x128xi32>
    %cst_67 = arith.constant 0.000000e+00 : f32
    %118 = vector.broadcast %cst_67 : f32 to vector<8x128xf32>
    %119 = arith.select %117, %115, %118 : vector<8x128xi1>, vector<8x128xf32>
    %cst_68 = arith.constant dense<0.000000e+00> : vector<128xf32>
    %120 = vector.multi_reduction <add>, %119, %cst_68 [0] : vector<8x128xf32> to vector<128xf32>
    %121 = vector.shape_cast %120 : vector<128xf32> to vector<1x128xf32>
    %cst_69 = arith.constant 0.000000e+00 : f32
    %122 = vector.broadcast %cst_69 : f32 to vector<8x128xf32>
    %123 = arith.select %117, %18, %122 : vector<8x128xi1>, vector<8x128xf32>
    %cst_70 = arith.constant dense<0.000000e+00> : vector<128xf32>
    %124 = vector.multi_reduction <add>, %115, %cst_70 [0] : vector<8x128xf32> to vector<128xf32>
    %125 = vector.shape_cast %124 : vector<128xf32> to vector<1x128xf32>
    %cst_71 = arith.constant dense<0.000000e+00> : vector<128xf32>
    %126 = vector.multi_reduction <add>, %123, %cst_71 [0] : vector<8x128xf32> to vector<128xf32>
    %127 = vector.shape_cast %126 : vector<128xf32> to vector<1x128xf32>
    %128 = arith.addf %125, %127 : vector<1x128xf32>
    %129 = arith.mulf %57, %88 : vector<8x128xf32>
    %130 = arith.mulf %129, %18 : vector<8x128xf32>
    %c1_i32_72 = arith.constant 1 : i32
    %131 = vector.broadcast %c1_i32_72 : i32 to vector<8x128xi32>
    %132 = arith.cmpi eq, %6, %131 : vector<8x128xi32>
    %cst_73 = arith.constant 0.000000e+00 : f32
    %133 = vector.broadcast %cst_73 : f32 to vector<8x128xf32>
    %134 = arith.select %132, %130, %133 : vector<8x128xi1>, vector<8x128xf32>
    %cst_74 = arith.constant dense<0.000000e+00> : vector<128xf32>
    %135 = vector.multi_reduction <add>, %134, %cst_74 [0] : vector<8x128xf32> to vector<128xf32>
    %136 = vector.shape_cast %135 : vector<128xf32> to vector<1x128xf32>
    %cst_75 = arith.constant 0.000000e+00 : f32
    %137 = vector.broadcast %cst_75 : f32 to vector<8x128xf32>
    %138 = arith.select %132, %18, %137 : vector<8x128xi1>, vector<8x128xf32>
    %cst_76 = arith.constant dense<0.000000e+00> : vector<128xf32>
    %139 = vector.multi_reduction <add>, %130, %cst_76 [0] : vector<8x128xf32> to vector<128xf32>
    %140 = vector.shape_cast %139 : vector<128xf32> to vector<1x128xf32>
    %cst_77 = arith.constant dense<0.000000e+00> : vector<128xf32>
    %141 = vector.multi_reduction <add>, %138, %cst_77 [0] : vector<8x128xf32> to vector<128xf32>
    %142 = vector.shape_cast %141 : vector<128xf32> to vector<1x128xf32>
    %143 = arith.addf %140, %142 : vector<1x128xf32>
    %144 = arith.mulf %69, %88 : vector<8x128xf32>
    %145 = arith.mulf %144, %18 : vector<8x128xf32>
    %c2_i32_78 = arith.constant 2 : i32
    %146 = vector.broadcast %c2_i32_78 : i32 to vector<8x128xi32>
    %147 = arith.cmpi eq, %6, %146 : vector<8x128xi32>
    %cst_79 = arith.constant 0.000000e+00 : f32
    %148 = vector.broadcast %cst_79 : f32 to vector<8x128xf32>
    %149 = arith.select %147, %145, %148 : vector<8x128xi1>, vector<8x128xf32>
    %cst_80 = arith.constant dense<0.000000e+00> : vector<128xf32>
    %150 = vector.multi_reduction <add>, %149, %cst_80 [0] : vector<8x128xf32> to vector<128xf32>
    %151 = vector.shape_cast %150 : vector<128xf32> to vector<1x128xf32>
    %cst_81 = arith.constant 0.000000e+00 : f32
    %152 = vector.broadcast %cst_81 : f32 to vector<8x128xf32>
    %153 = arith.select %147, %18, %152 : vector<8x128xi1>, vector<8x128xf32>
    %cst_82 = arith.constant dense<0.000000e+00> : vector<128xf32>
    %154 = vector.multi_reduction <add>, %145, %cst_82 [0] : vector<8x128xf32> to vector<128xf32>
    %155 = vector.shape_cast %154 : vector<128xf32> to vector<1x128xf32>
    %cst_83 = arith.constant dense<0.000000e+00> : vector<128xf32>
    %156 = vector.multi_reduction <add>, %153, %cst_83 [0] : vector<8x128xf32> to vector<128xf32>
    %157 = vector.shape_cast %156 : vector<128xf32> to vector<1x128xf32>
    %158 = arith.addf %155, %157 : vector<1x128xf32>
    %159 = arith.mulf %81, %88 : vector<8x128xf32>
    %160 = arith.mulf %159, %18 : vector<8x128xf32>
    %c3_i32_84 = arith.constant 3 : i32
    %161 = vector.broadcast %c3_i32_84 : i32 to vector<8x128xi32>
    %162 = arith.cmpi eq, %6, %161 : vector<8x128xi32>
    %cst_85 = arith.constant 0.000000e+00 : f32
    %163 = vector.broadcast %cst_85 : f32 to vector<8x128xf32>
    %164 = arith.select %162, %160, %163 : vector<8x128xi1>, vector<8x128xf32>
    %cst_86 = arith.constant dense<0.000000e+00> : vector<128xf32>
    %165 = vector.multi_reduction <add>, %164, %cst_86 [0] : vector<8x128xf32> to vector<128xf32>
    %166 = vector.shape_cast %165 : vector<128xf32> to vector<1x128xf32>
    %cst_87 = arith.constant 0.000000e+00 : f32
    %167 = vector.broadcast %cst_87 : f32 to vector<8x128xf32>
    %168 = arith.select %162, %18, %167 : vector<8x128xi1>, vector<8x128xf32>
    %cst_88 = arith.constant dense<0.000000e+00> : vector<128xf32>
    %169 = vector.multi_reduction <add>, %160, %cst_88 [0] : vector<8x128xf32> to vector<128xf32>
    %170 = vector.shape_cast %169 : vector<128xf32> to vector<1x128xf32>
    %cst_89 = arith.constant dense<0.000000e+00> : vector<128xf32>
    %171 = vector.multi_reduction <add>, %168, %cst_89 [0] : vector<8x128xf32> to vector<128xf32>
    %172 = vector.shape_cast %171 : vector<128xf32> to vector<1x128xf32>
    %173 = arith.addf %170, %172 : vector<1x128xf32>
    %c0_90 = arith.constant 0 : index
    %c0_91 = arith.constant 0 : index
    %c0_92 = arith.constant 0 : index
    %c0_93 = arith.constant 0 : index
    %174 = vector.load %arg5[%c0_90, %c0_91, %c0_92, %c0_93] : memref<1x1x4x128xf32, #tpu.memory_space<vmem>>, vector<1x1x4x128xf32>
    %175 = vector.shape_cast %174 : vector<1x1x4x128xf32> to vector<4x128xf32>
    %176 = tpu.concatenate %121, %136, %151, %166 in 0 : vector<1x128xf32>, vector<1x128xf32>, vector<1x128xf32>, vector<1x128xf32> -> vector<4x128xf32>
    %177 = arith.addf %175, %176 : vector<4x128xf32>
    %c0_94 = arith.constant 0 : index
    %c0_95 = arith.constant 0 : index
    %c0_96 = arith.constant 0 : index
    %c0_97 = arith.constant 0 : index
    %178 = vector.load %arg5[%c0_94, %c0_95, %c0_96, %c0_97] : memref<1x1x4x128xf32, #tpu.memory_space<vmem>>, vector<1x1x4x128xf32>
    %179 = vector.shape_cast %178 : vector<1x1x4x128xf32> to vector<4x128xf32>
    %180 = vector.shape_cast %177 : vector<4x128xf32> to vector<1x1x4x128xf32>
    tpu.vector_store %arg5[%c0_94, %c0_95, %c0_96, %c0_97], %180 {strides = array<i32>} : memref<1x1x4x128xf32, #tpu.memory_space<vmem>>, vector<1x1x4x128xf32>,
    %c0_98 = arith.constant 0 : index
    %c0_99 = arith.constant 0 : index
    %c0_100 = arith.constant 0 : index
    %c0_101 = arith.constant 0 : index
    %181 = vector.load %arg6[%c0_98, %c0_99, %c0_100, %c0_101] : memref<1x1x4x128xf32, #tpu.memory_space<vmem>>, vector<1x1x4x128xf32>
    %182 = vector.shape_cast %181 : vector<1x1x4x128xf32> to vector<4x128xf32>
    %183 = tpu.concatenate %128, %143, %158, %173 in 0 : vector<1x128xf32>, vector<1x128xf32>, vector<1x128xf32>, vector<1x128xf32> -> vector<4x128xf32>
    %184 = arith.addf %182, %183 : vector<4x128xf32>
    %c0_102 = arith.constant 0 : index
    %c0_103 = arith.constant 0 : index
    %c0_104 = arith.constant 0 : index
    %c0_105 = arith.constant 0 : index
    %185 = vector.load %arg6[%c0_102, %c0_103, %c0_104, %c0_105] : memref<1x1x4x128xf32, #tpu.memory_space<vmem>>, vector<1x1x4x128xf32>
    %186 = vector.shape_cast %185 : vector<1x1x4x128xf32> to vector<4x128xf32>
    %187 = vector.shape_cast %184 : vector<4x128xf32> to vector<1x1x4x128xf32>
    tpu.vector_store %arg6[%c0_102, %c0_103, %c0_104, %c0_105], %187 {strides = array<i32>} : memref<1x1x4x128xf32, #tpu.memory_space<vmem>>, vector<1x1x4x128xf32>,
    return
  }
  func.func @transform_0(%arg0: i32, %arg1: i32, %arg2: i32) -> (i32, i32, i32, i32) {
    %c1_i32 = arith.constant 1 : i32
    %0 = arith.muli %arg1, %c1_i32 : i32
    %1 = arith.addi %0, %arg2 : i32
    %c0_i32 = arith.constant 0 : i32
    %c0_i32_0 = arith.constant 0 : i32
    %c0_i32_1 = arith.constant 0 : i32
    return %arg0, %c0_i32, %1, %c0_i32_0 : i32, i32, i32, i32
  }
  func.func @transform_1(%arg0: i32, %arg1: i32, %arg2: i32) -> (i32, i32, i32) {
    %c1_i32 = arith.constant 1 : i32
    %0 = arith.muli %arg1, %c1_i32 : i32
    %1 = arith.addi %0, %arg2 : i32
    %c0_i32 = arith.constant 0 : i32
    %c0_i32_0 = arith.constant 0 : i32
    return %arg0, %1, %c0_i32 : i32, i32, i32
  }
  func.func @transform_2(%arg0: i32, %arg1: i32, %arg2: i32) -> (i32, i32, i32, i32) {
    %c0_i32 = arith.constant 0 : i32
    %c0_i32_0 = arith.constant 0 : i32
    %c0_i32_1 = arith.constant 0 : i32
    return %arg0, %arg1, %c0_i32, %c0_i32_0 : i32, i32, i32, i32
  }
  func.func @transform_3(%arg0: i32, %arg1: i32, %arg2: i32) -> (i32, i32, i32, i32) {
    %c0_i32 = arith.constant 0 : i32
    %c0_i32_0 = arith.constant 0 : i32
    %c0_i32_1 = arith.constant 0 : i32
    return %arg0, %arg1, %c0_i32, %c0_i32_0 : i32, i32, i32, i32
  }
  func.func @transform_4(%arg0: i32, %arg1: i32, %arg2: i32) -> (i32, i32, i32, i32) {
    %c0_i32 = arith.constant 0 : i32
    %c0_i32_0 = arith.constant 0 : i32
    %c0_i32_1 = arith.constant 0 : i32
    return %arg0, %arg1, %c0_i32, %c0_i32_0 : i32, i32, i32, i32
  }
  func.func @transform_5(%arg0: i32, %arg1: i32, %arg2: i32) -> (i32, i32, i32, i32) {
    %c0_i32 = arith.constant 0 : i32
    %c0_i32_0 = arith.constant 0 : i32
    %c0_i32_1 = arith.constant 0 : i32
    return %arg0, %arg1, %c0_i32, %c0_i32_0 : i32, i32, i32, i32
  }
}

</mosaic_0001>

<llo_original>
// kernel: combined_loss.1
$region0: #{combined_loss.1}
  #allocation0 [shape = 'u32[]', space=smem, size = 0x4, offset = 0x4, fixed_abs, tag = 'smem constant byte address 0x4 - core index']
  #allocation1 [shape = 'u32[144,128]{1,0:T(1,128)}', space=vmem, size = 0x12000, scoped, tag = 'internal scratch']
  %s0 = inlined_call_operand.vmem [shape: f32[2,4,8,128], index: 0, kind: input, shape index: {}]
  %s1 = inlined_call_operand.vmem [shape: s32[2,8,128], index: 1, kind: input, shape index: {}]
  %s2 = inlined_call_operand.vmem [shape: f32[2,1,4,128], index: 2, kind: output, shape index: {0}]
  %s3 = inlined_call_operand.vmem [shape: f32[2,1,4,128], index: 3, kind: output, shape index: {1}]
  %s4 = inlined_call_operand.vmem [shape: f32[2,1,1,128], index: 4, kind: output, shape index: {2}]
  %s5 = inlined_call_operand.vmem [shape: f32[2,1,1,128], index: 5, kind: output, shape index: {3}]
  %6 = xla_tuple %s2, %s3, %s4, %s5
  %s7 = sld [smem:[#allocation0]]
  $region69: #{combined_loss.1} parent=0
    _
  %s9 = ssub.s32 1, %s7
  %s10 = scalar_select 0, %s9, %s7
  loop: start=0, step=1, limit=4
  $region2: #{combined_loss.1} parent=0 // loop_pre_header
    _
  $region3: #{combined_loss.1} parent=0 // loop_header
    %s12 = sphi 0, %s16
    %p13 = scmp.ge.s32.totalorder %s12, 4
    %s19 = sphi 0, %s38
    %s20 = sphi 0, %s34
    %s21 = sphi 0, %s30
    %s22 = sphi 0, %s19
    %s23 = sphi 0, %s20
    %s24 = sphi 0, %s21
    %s25 = sphi 0, %s22
    %s26 = sphi 0, %s23
    %s27 = sphi 0, %s24
    %s45 = sphi 0, %s47
    %s48 = sphi 0, %s45
    %s49 = sphi 0, %s48
    %s65 = sphi 0, %s49
    %s75 = sphi 0, %s77
    %s78 = sphi 0, %s75
    %s79 = sphi 0, %s78
    %s95 = sphi 0, %s79
    %s103 = sphi 0, %s105
    %s106 = sphi 0, %s103
    %s107 = sphi 0, %s106
    %s123 = sphi 0, %s107
    %s131 = sphi 0, %s133
    %s134 = sphi 0, %s131
    %s135 = sphi 0, %s134
    %s151 = sphi 0, %s135
    %s159 = sphi 0, %s161
    %s162 = sphi 0, %s159
    %s163 = sphi 0, %s162
    %s179 = sphi 0, %s163
    %s187 = sphi 0, %s189
    %s190 = sphi 0, %s187
    %s191 = sphi 0, %s190
    %s207 = sphi 0, %s191
  $region4: #{combined_loss.1} parent=0 // loop_header_branch
    %15 = sbr.rel (%p13) target = $region8
  $region5: #{combined_loss.1} parent=0 // loop_body
    %s17 = ssub.s32 %s12, 1
    %s18 = ssub.s32 %s12, 2
    %s28 = sadd.s32 1, %s21
    %p29 = scmp.ge.s32.totalorder %s28, 1
    %s30 = scalar_select %p29, 0, %s28
    %s31 = sadd.s32 1, %s20
    %s32 = scalar_select %p29, %s31, %s20
    %p33 = scmp.ge.s32.totalorder %s32, 1
    %s34 = scalar_select %p33, 0, %s32
    %s35 = sadd.s32 1, %s19
    %s36 = scalar_select %p33, %s35, %s19
    %p37 = scmp.ge.s32.totalorder %s36, 2
    %s38 = scalar_select %p37, 0, %s36
    %s39 = sadd.s32 %s20, %s21
    %s40 = sadd.s32 %s34, %s30
    %s41 = ssub.s32 %s19, %s38
    %s42 = ssub.s32 %s39, %s40
    %s43 = sor.u32 %s41, %s42
    %p44 = scmp.eq.s32.totalorder %s43, 0
    %s46 = sadd.s32 %s45, 1
    %s47 = scalar_select %p44, %s45, %s46
    %p50 = pneg %p44
    %p51 = scmp.eq.s32.totalorder %s12, 1
    %p52 = por %p50, %p51
    %p53 = scmp.ne.s32.totalorder %s45, %s48
    %p54 = scmp.eq.s32.totalorder %s12, 0
    %p55 = por %p53, %p54
    %p56 = scmp.ne.s32.totalorder %s45, %s48
    %p57 = scmp.eq.s32.totalorder %s17, 1
    %p58 = por %p56, %p57
    %p59 = scmp.ne.s32.totalorder %s48, %s49
    %p60 = scmp.eq.s32.totalorder %s17, 0
    %p61 = por %p59, %p60
    %p62 = scmp.ne.s32.totalorder %s48, %s49
    %p63 = scmp.eq.s32.totalorder %s18, 1
    %p64 = por %p62, %p63
    %p66 = scmp.ne.s32.totalorder %s49, %s65
    %p67 = scmp.eq.s32.totalorder %s18, 0
    %p68 = por %p66, %p67
    %s69 = sadd.s32 %s20, %s21
    %s70 = sadd.s32 %s34, %s30
    %s71 = ssub.s32 %s19, %s38
    %s72 = ssub.s32 %s69, %s70
    %s73 = sor.u32 %s71, %s72
    %p74 = scmp.eq.s32.totalorder %s73, 0
    %s76 = sadd.s32 %s75, 1
    %s77 = scalar_select %p74, %s75, %s76
    %p80 = pneg %p74
    %p81 = scmp.eq.s32.totalorder %s12, 1
    %p82 = por %p80, %p81
    %p83 = scmp.ne.s32.totalorder %s75, %s78
    %p84 = scmp.eq.s32.totalorder %s12, 0
    %p85 = por %p83, %p84
    %p86 = scmp.ne.s32.totalorder %s75, %s78
    %p87 = scmp.eq.s32.totalorder %s17, 1
    %p88 = por %p86, %p87
    %p89 = scmp.ne.s32.totalorder %s78, %s79
    %p90 = scmp.eq.s32.totalorder %s17, 0
    %p91 = por %p89, %p90
    %p92 = scmp.ne.s32.totalorder %s78, %s79
    %p93 = scmp.eq.s32.totalorder %s18, 1
    %p94 = por %p92, %p93
    %p96 = scmp.ne.s32.totalorder %s79, %s95
    %p97 = scmp.eq.s32.totalorder %s18, 0
    %p98 = por %p96, %p97
    %s99 = ssub.s32 %s19, %s38
    %s100 = ssub.s32 %s20, %s34
    %s101 = sor.u32 %s99, %s100
    %p102 = scmp.eq.s32.totalorder %s101, 0
    %s104 = sadd.s32 %s103, 1
    %s105 = scalar_select %p102, %s103, %s104
    %p108 = pneg %p102
    %p109 = scmp.eq.s32.totalorder %s12, 1
    %p110 = por %p108, %p109
    %p111 = scmp.ne.s32.totalorder %s103, %s106
    %p112 = scmp.eq.s32.totalorder %s12, 0
    %p113 = por %p111, %p112
    %p114 = scmp.ne.s32.totalorder %s103, %s106
    %p115 = scmp.eq.s32.totalorder %s17, 1
    %p116 = por %p114, %p115
    %p117 = scmp.ne.s32.totalorder %s106, %s107
    %p118 = scmp.eq.s32.totalorder %s17, 0
    %p119 = por %p117, %p118
    %p120 = scmp.ne.s32.totalorder %s106, %s107
    %p121 = scmp.eq.s32.totalorder %s18, 1
    %p122 = por %p120, %p121
    %p124 = scmp.ne.s32.totalorder %s107, %s123
    %p125 = scmp.eq.s32.totalorder %s18, 0
    %p126 = por %p124, %p125
    %s127 = ssub.s32 %s19, %s38
    %s128 = ssub.s32 %s20, %s34
    %s129 = sor.u32 %s127, %s128
    %p130 = scmp.eq.s32.totalorder %s129, 0
    %s132 = sadd.s32 %s131, 1
    %s133 = scalar_select %p130, %s131, %s132
    %p136 = pneg %p130
    %p137 = scmp.eq.s32.totalorder %s12, 1
    %p138 = por %p136, %p137
    %p139 = scmp.ne.s32.totalorder %s131, %s134
    %p140 = scmp.eq.s32.totalorder %s12, 0
    %p141 = por %p139, %p140
    %p142 = scmp.ne.s32.totalorder %s131, %s134
    %p143 = scmp.eq.s32.totalorder %s17, 1
    %p144 = por %p142, %p143
    %p145 = scmp.ne.s32.totalorder %s134, %s135
    %p146 = scmp.eq.s32.totalorder %s17, 0
    %p147 = por %p145, %p146
    %p148 = scmp.ne.s32.totalorder %s134, %s135
    %p149 = scmp.eq.s32.totalorder %s18, 1
    %p150 = por %p148, %p149
    %p152 = scmp.ne.s32.totalorder %s135, %s151
    %p153 = scmp.eq.s32.totalorder %s18, 0
    %p154 = por %p152, %p153
    %s155 = ssub.s32 %s19, %s38
    %s156 = ssub.s32 %s20, %s34
    %s157 = sor.u32 %s155, %s156
    %p158 = scmp.eq.s32.totalorder %s157, 0
    %s160 = sadd.s32 %s159, 1
    %s161 = scalar_select %p158, %s159, %s160
    %p164 = pneg %p158
    %p165 = scmp.eq.s32.totalorder %s12, 1
    %p166 = por %p164, %p165
    %p167 = scmp.ne.s32.totalorder %s159, %s162
    %p168 = scmp.eq.s32.totalorder %s12, 0
    %p169 = por %p167, %p168
    %p170 = scmp.ne.s32.totalorder %s159, %s162
    %p171 = scmp.eq.s32.totalorder %s17, 1
    %p172 = por %p170, %p171
    %p173 = scmp.ne.s32.totalorder %s162, %s163
    %p174 = scmp.eq.s32.totalorder %s17, 0
    %p175 = por %p173, %p174
    %p176 = scmp.ne.s32.totalorder %s162, %s163
    %p177 = scmp.eq.s32.totalorder %s18, 1
    %p178 = por %p176, %p177
    %p180 = scmp.ne.s32.totalorder %s163, %s179
    %p181 = scmp.eq.s32.totalorder %s18, 0
    %p182 = por %p180, %p181
    %s183 = ssub.s32 %s19, %s38
    %s184 = ssub.s32 %s20, %s34
    %s185 = sor.u32 %s183, %s184
    %p186 = scmp.eq.s32.totalorder %s185, 0
    %s188 = sadd.s32 %s187, 1
    %s189 = scalar_select %p186, %s187, %s188
    %p192 = pneg %p186
    %p193 = scmp.eq.s32.totalorder %s12, 1
    %p194 = por %p192, %p193
    %p195 = scmp.ne.s32.totalorder %s187, %s190
    %p196 = scmp.eq.s32.totalorder %s12, 0
    %p197 = por %p195, %p196
    %p198 = scmp.ne.s32.totalorder %s187, %s190
    %p199 = scmp.eq.s32.totalorder %s17, 1
    %p200 = por %p198, %p199
    %p201 = scmp.ne.s32.totalorder %s190, %s191
    %p202 = scmp.eq.s32.totalorder %s17, 0
    %p203 = por %p201, %p202
    %p204 = scmp.ne.s32.totalorder %s190, %s191
    %p205 = scmp.eq.s32.totalorder %s18, 1
    %p206 = por %p204, %p205
    %p208 = scmp.ne.s32.totalorder %s191, %s207
    %p209 = scmp.eq.s32.totalorder %s18, 0
    %p210 = por %p208, %p209
    %p211 = scmp.le.s32.totalorder 1, %s12
    %p212 = scmp.lt.s32.totalorder %s12, 3
    %p213 = pnand %p211, %p212
    %p214 = pneg %p213
    // Predicated region
    $region9: #{combined_loss.1} parent=5 // pred_check
      _
    $region10: #{combined_loss.1} parent=5 // pred_check_branch
      %216 = sbr.rel (%p213) target = $region12
    $region11: #{combined_loss.1} parent=5 // pred_region
      %s217 = ssub.s32 %s12, 1
    $region12: #{combined_loss.1} parent=5 // pred_fallthru
      _
    %p218 = scmp.lt.s32.totalorder %s12, 2
    // Predicated region
    $region13: #{combined_loss.1} parent=5 // pred_check
      %p219 = pneg %p218
    $region14: #{combined_loss.1} parent=5 // pred_check_branch
      %221 = sbr.rel (%p219) target = $region16
    $region15: #{combined_loss.1} parent=5 // pred_region
      // Predicated region
      $region17: #{combined_loss.1} parent=15 // pred_check
        %p222 = pneg %p55
      $region18: #{combined_loss.1} parent=15 // pred_check_branch
        %224 = sbr.rel (%p222) target = $region20
      $region19: #{combined_loss.1} parent=15 // pred_region
        %s225 = sadd.s32 %s20, %s21
        %p226 = scmp.lt.s32.totalorder %s19, 1
        %s227 = scalar_select %p226, %s19, 1
        %p228 = scmp.lt.s32.totalorder %s225, 0
        %s229 = scalar_select %p228, %s225, 0
        %s230 = smul.addr %s227, 4
        %s231 = sadd.s32 %s229, %s230
        %s232 = smul.addr %s231, 8
        %s233 = scalar_lea.vmem %s0, %s232
        %s234 = sadd.s32 %s20, %s21
      $region20: #{combined_loss.1} parent=15 // pred_fallthru
        _
      // Predicated region
      $region21: #{combined_loss.1} parent=15 // pred_check
        %p235 = pneg %p85
      $region22: #{combined_loss.1} parent=15 // pred_check_branch
        %237 = sbr.rel (%p235) target = $region24
      $region23: #{combined_loss.1} parent=15 // pred_region
        %s238 = sadd.s32 %s20, %s21
        %p239 = scmp.lt.s32.totalorder %s19, 1
        %s240 = scalar_select %p239, %s19, 1
        %p241 = scmp.lt.s32.totalorder %s238, 0
        %s242 = scalar_select %p241, %s238, 0
        %s243 = sadd.s32 %s242, %s240
        %s244 = smul.addr %s243, 8
        %s245 = scalar_lea.vmem %s1, %s244
        %s246 = sadd.s32 %s20, %s21
      $region24: #{combined_loss.1} parent=15 // pred_fallthru
        _
    $region16: #{combined_loss.1} parent=5 // pred_fallthru
      _
    %p247 = scmp.le.s32.totalorder 1, %s12
    %p248 = scmp.lt.s32.totalorder %s12, 3
    %p249 = pnand %p247, %p248
    %p250 = pneg %p249
    // Predicated region
    $region25: #{combined_loss.1} parent=5 // pred_check
      _
    $region26: #{combined_loss.1} parent=5 // pred_check_branch
      %252 = sbr.rel (%p249) target = $region28
    $region27: #{combined_loss.1} parent=5 // pred_region
      %s253 = ssub.s32 %s12, 1
      %s254 = sadd.s32 %s23, %s24
      %p255 = scmp.lt.s32.totalorder %s22, 1
      %s256 = scalar_select %p255, %s22, 1
      %p257 = scmp.lt.s32.totalorder %s254, 0
      %s258 = scalar_select %p257, %s254, 0
      %s259 = smul.addr %s256, 4
      %s260 = sadd.s32 %s258, %s259
      %s261 = smul.addr %s260, 8
      %s262 = scalar_lea.vmem %s0, %s261
      %p263 = pneg %p61
      %p264 = pneg %p58
      %s265 = sadd.s32 %s23, %s24
      %p266 = scmp.lt.s32.totalorder %s22, 1
      %s267 = scalar_select %p266, %s22, 1
      %p268 = scmp.lt.s32.totalorder %s265, 0
      %s269 = scalar_select %p268, %s265, 0
      %s270 = sadd.s32 %s269, %s267
      %s271 = smul.addr %s270, 8
      %s272 = scalar_lea.vmem %s1, %s271
      %p273 = pneg %p91
      %p274 = pneg %p88
      %p275 = pneg %p119
      %p276 = pneg %p116
      %p277 = scmp.lt.s32.totalorder %s22, 1
      %s278 = scalar_select %p277, %s22, 1
      %p279 = scmp.lt.s32.totalorder %s23, 0
      %s280 = scalar_select %p279, %s23, 0
      %s281 = sadd.s32 %s280, %s278
      %s282 = smul.addr %s281, 4
      %s283 = scalar_lea.vmem %s2, %s282
      %p284 = pneg %p147
      %p285 = pneg %p144
      %p286 = scmp.lt.s32.totalorder %s22, 1
      %s287 = scalar_select %p286, %s22, 1
      %p288 = scmp.lt.s32.totalorder %s23, 0
      %s289 = scalar_select %p288, %s23, 0
      %s290 = sadd.s32 %s289, %s287
      %s291 = smul.addr %s290, 4
      %s292 = scalar_lea.vmem %s3, %s291
      %p293 = pneg %p175
      %p294 = pneg %p172
      %p295 = scmp.lt.s32.totalorder %s22, 1
      %s296 = scalar_select %p295, %s22, 1
      %p297 = scmp.lt.s32.totalorder %s23, 0
      %s298 = scalar_select %p297, %s23, 0
      %s299 = sadd.s32 %s298, %s296
      %s300 = scalar_lea.vmem %s4, %s299
      %p301 = pneg %p203
      %p302 = pneg %p200
      %p303 = scmp.lt.s32.totalorder %s22, 1
      %s304 = scalar_select %p303, %s22, 1
      %p305 = scmp.lt.s32.totalorder %s23, 0
      %s306 = scalar_select %p305, %s23, 0
      %s307 = sadd.s32 %s306, %s304
      %s308 = scalar_lea.vmem %s5, %s307
      %s309 = sadd.s32 %s23, %s24
      %p310 = scmp.lt.s32.totalorder %s22, 1
      %s311 = scalar_select %p310, %s22, 1
      %p312 = scmp.lt.s32.totalorder %s309, 0
      %s313 = scalar_select %p312, %s309, 0
      %s314 = smul.addr %s311, 4
      %s315 = sadd.s32 %s313, %s314
      %s316 = smul.addr %s315, 8
      %s317 = scalar_lea.vmem %s0, %s316
      %s318 = sadd.s32 %s23, %s24
      %s319 = sadd.s32 %s23, %s24
      %p320 = scmp.lt.s32.totalorder %s22, 1
      %s321 = scalar_select %p320, %s22, 1
      %p322 = scmp.lt.s32.totalorder %s319, 0
      %s323 = scalar_select %p322, %s319, 0
      %s324 = sadd.s32 %s323, %s321
      %s325 = smul.addr %s324, 8
      %s326 = scalar_lea.vmem %s1, %s325
      %s327 = sadd.s32 %s23, %s24
      %p328 = scmp.lt.s32.totalorder %s22, 1
      %s329 = scalar_select %p328, %s22, 1
      %p330 = scmp.lt.s32.totalorder %s23, 0
      %s331 = scalar_select %p330, %s23, 0
      %s332 = sadd.s32 %s331, %s329
      %s333 = smul.addr %s332, 4
      %s334 = scalar_lea.vmem %s2, %s333
      %p335 = scmp.lt.s32.totalorder %s22, 1
      %s336 = scalar_select %p335, %s22, 1
      %p337 = scmp.lt.s32.totalorder %s23, 0
      %s338 = scalar_select %p337, %s23, 0
      %s339 = sadd.s32 %s338, %s336
      %s340 = smul.addr %s339, 4
      %s341 = scalar_lea.vmem %s3, %s340
      %p342 = scmp.lt.s32.totalorder %s22, 1
      %s343 = scalar_select %p342, %s22, 1
      %p344 = scmp.lt.s32.totalorder %s23, 0
      %s345 = scalar_select %p344, %s23, 0
      %s346 = sadd.s32 %s345, %s343
      %s347 = scalar_lea.vmem %s4, %s346
      %p348 = scmp.lt.s32.totalorder %s22, 1
      %s349 = scalar_select %p348, %s22, 1
      %p350 = scmp.lt.s32.totalorder %s23, 0
      %s351 = scalar_select %p350, %s23, 0
      %s352 = sadd.s32 %s351, %s349
      %s353 = scalar_lea.vmem %s5, %s352
      %s354 = sadd.s32 %s23, %s24
      %p355 = scmp.eq.s32.totalorder %s24, 0
      // Predicated region
      $region29: #{combined_loss.1} parent=27 // pred_check
        %p356 = pneg %p355
      $region30: #{combined_loss.1} parent=27 // pred_check_branch
        %358 = sbr.rel (%p356) target = $region32
      $region31: #{combined_loss.1} parent=27 // pred_region
        %359 = vst [vmem:[%s334] sm:$0xf] 0.0
        %360 = vst [vmem:[%s341] sm:$0xf] 0.0
        %361 = vst [vmem:[%s347] sm:$0x1] 0.0
        %362 = vst [vmem:[%s353] sm:$0x1] 0.0
      $region32: #{combined_loss.1} parent=27 // pred_fallthru
        _
      %v363 = vld [vmem:[%s326] sm:$0xff]
      %v364 = vlaneseq
      %v365 = vshrl.u32 %v364, 7
      %v366 = vlaneseq
      %v367 = vand.u32 %v366, 127
      %s368 = smul.u32 %s354, 8
      %v369 = vstv %s368
      %v370 = vadd.s32 %v369, %v365
      %v371 = vmul.u32 %v370, 128
      %v372 = vadd.s32 %v371, %v367
      %vm373 = vcmp.lt.s32.totalorder %v372, 256
      %v374 = vsel %vm373, 1, 0
      %v375 = vcvt.s32.f32 %v374
      %v376 = vld [vmem:[%s317] sm:$0xff]
      %v377 = vsel %vm373, %v376, 0.0
      %s378 = scalar_lea.vmem %s317, 8
      %v379 = vld [vmem:[%s378] sm:$0xff]
      %v380 = vsel %vm373, %v379, 0.0
      %v381 = vmax.f32 %v377, %v380
      %s382 = scalar_lea.vmem %s317, 16
      %v383 = vld [vmem:[%s382] sm:$0xff]
      %v384 = vsel %vm373, %v383, 0.0
      %v385 = vmax.f32 %v381, %v384
      %s386 = scalar_lea.vmem %s317, 24
      %v387 = vld [vmem:[%s386] sm:$0xff]
      %v388 = vsel %vm373, %v387, 0.0
      %v389 = vmax.f32 %v385, %v388
      %v390 = vsub.f32 %v377, %v389
      %v391 = vmul.f32 %v390, 1.442695
      %v392 = vpow.pop %v391
      %v393 = vadd.f32 %v392, 0.0
      %vm394 = vcmp.eq.s32.totalorder %v363, 0
      %v395 = vsel %vm394, %v377, 0.0
      %v396 = vadd.f32 %v395, 0.0
      %v397 = vsub.f32 %v380, %v389
      %v398 = vmul.f32 %v397, 1.442695
      %v399 = vpow.pop %v398
      %v400 = vadd.f32 %v393, %v399
      %vm401 = vcmp.eq.s32.totalorder %v363, 1
      %v402 = vsel %vm401, %v380, 0.0
      %v403 = vadd.f32 %v396, %v402
      %v404 = vsub.f32 %v384, %v389
      %v405 = vmul.f32 %v404, 1.442695
      %v406 = vpow.pop %v405
      %v407 = vadd.f32 %v400, %v406
      %vm408 = vcmp.eq.s32.totalorder %v363, 2
      %v409 = vsel %vm408, %v384, 0.0
      %v410 = vadd.f32 %v403, %v409
      %v411 = vsub.f32 %v388, %v389
      %v412 = vmul.f32 %v411, 1.442695
      %v413 = vpow.pop %v412
      %v414 = vadd.f32 %v407, %v413
      %vm415 = vcmp.eq.s32.totalorder %v363, 3
      %v416 = vsel %vm415, %v388, 0.0
      %v417 = vadd.f32 %v410, %v416
      %v418 = vrcp.pop %v414
      %vm419 = vcmp.ne.s32.totalorder %v363, 0
      %v420 = vsel %vm419, 1, 0
      %v421 = vcvt.s32.f32 %v420
      %v422 = vmul.f32 %v421, %v375
      %v423 = vlog2.pop %v414
      %v424 = vmul.f32 %v423, 0.6931472
      %v425 = vadd.f32 %v424, %v389
      %v426 = vsub.f32 %v425, %v417
      %v427 = vld [vmem:[%s347] sm:$0x1]
      %v428 = vmul.f32 %v426, %v422
      %v429 = vrot.slane %v428, 4
      %v430 = vadd.f32 %v428, %v429
      %v431 = vrot.slane %v430, 2
      %v432 = vadd.f32 %v430, %v431
      %v433 = vrot.slane %v432, 1
      %v434 = vadd.f32 %v432, %v433
      %v435 = vadd.f32 %v427, %v434
      %436 = vst [vmem:[%s347] sm:$0x1] %v435
      %v437 = vld [vmem:[%s353] sm:$0x1]
      %v438 = vrot.slane %v422, 4
      %v439 = vadd.f32 %v422, %v438
      %v440 = vrot.slane %v439, 2
      %v441 = vadd.f32 %v439, %v440
      %v442 = vrot.slane %v441, 1
      %v443 = vadd.f32 %v441, %v442
      %v444 = vadd.f32 %v437, %v443
      %445 = vst [vmem:[%s353] sm:$0x1] %v444
      %v446 = vmul.f32 %v392, %v418
      %v447 = vmul.f32 %v446, %v375
      %v448 = vsel %vm394, %v447, 0.0
      %v449 = vrot.slane %v448, 4
      %v450 = vadd.f32 %v448, %v449
      %v451 = vrot.slane %v450, 2
      %v452 = vadd.f32 %v450, %v451
      %v453 = vrot.slane %v452, 1
      %v454 = vadd.f32 %v452, %v453
      %v455 = vsel %vm394, %v375, 0.0
      %v456 = vrot.slane %v447, 4
      %v457 = vadd.f32 %v447, %v456
      %v458 = vrot.slane %v457, 2
      %v459 = vadd.f32 %v457, %v458
      %v460 = vrot.slane %v459, 1
      %v461 = vadd.f32 %v459, %v460
      %v462 = vrot.slane %v455, 4
      %v463 = vadd.f32 %v455, %v462
      %v464 = vrot.slane %v463, 2
      %v465 = vadd.f32 %v463, %v464
      %v466 = vrot.slane %v465, 1
      %v467 = vadd.f32 %v465, %v466
      %v468 = vadd.f32 %v461, %v467
      %v469 = vmul.f32 %v399, %v418
      %v470 = vmul.f32 %v469, %v375
      %v471 = vsel %vm401, %v470, 0.0
      %v472 = vrot.slane %v471, 4
      %v473 = vadd.f32 %v471, %v472
      %v474 = vrot.slane %v473, 2
      %v475 = vadd.f32 %v473, %v474
      %v476 = vrot.slane %v475, 1
      %v477 = vadd.f32 %v475, %v476
      %v478 = vsel %vm401, %v375, 0.0
      %v479 = vrot.slane %v470, 4
      %v480 = vadd.f32 %v470, %v479
      %v481 = vrot.slane %v480, 2
      %v482 = vadd.f32 %v480, %v481
      %v483 = vrot.slane %v482, 1
      %v484 = vadd.f32 %v482, %v483
      %v485 = vrot.slane %v478, 4
      %v486 = vadd.f32 %v478, %v485
      %v487 = vrot.slane %v486, 2
      %v488 = vadd.f32 %v486, %v487
      %v489 = vrot.slane %v488, 1
      %v490 = vadd.f32 %v488, %v489
      %v491 = vadd.f32 %v484, %v490
      %v492 = vmul.f32 %v406, %v418
      %v493 = vmul.f32 %v492, %v375
      %v494 = vsel %vm408, %v493, 0.0
      %v495 = vrot.slane %v494, 4
      %v496 = vadd.f32 %v494, %v495
      %v497 = vrot.slane %v496, 2
      %v498 = vadd.f32 %v496, %v497
      %v499 = vrot.slane %v498, 1
      %v500 = vadd.f32 %v498, %v499
      %v501 = vsel %vm408, %v375, 0.0
      %v502 = vrot.slane %v493, 4
      %v503 = vadd.f32 %v493, %v502
      %v504 = vrot.slane %v503, 2
      %v505 = vadd.f32 %v503, %v504
      %v506 = vrot.slane %v505, 1
      %v507 = vadd.f32 %v505, %v506
      %v508 = vrot.slane %v501, 4
      %v509 = vadd.f32 %v501, %v508
      %v510 = vrot.slane %v509, 2
      %v511 = vadd.f32 %v509, %v510
      %v512 = vrot.slane %v511, 1
      %v513 = vadd.f32 %v511, %v512
      %v514 = vadd.f32 %v507, %v513
      %v515 = vmul.f32 %v413, %v418
      %v516 = vmul.f32 %v515, %v375
      %v517 = vsel %vm415, %v516, 0.0
      %v518 = vrot.slane %v517, 4
      %v519 = vadd.f32 %v517, %v518
      %v520 = vrot.slane %v519, 2
      %v521 = vadd.f32 %v519, %v520
      %v522 = vrot.slane %v521, 1
      %v523 = vadd.f32 %v521, %v522
      %v524 = vsel %vm415, %v375, 0.0
      %v525 = vrot.slane %v516, 4
      %v526 = vadd.f32 %v516, %v525
      %v527 = vrot.slane %v526, 2
      %v528 = vadd.f32 %v526, %v527
      %v529 = vrot.slane %v528, 1
      %v530 = vadd.f32 %v528, %v529
      %v531 = vrot.slane %v524, 4
      %v532 = vadd.f32 %v524, %v531
      %v533 = vrot.slane %v532, 2
      %v534 = vadd.f32 %v532, %v533
      %v535 = vrot.slane %v534, 1
      %v536 = vadd.f32 %v534, %v535
      %v537 = vadd.f32 %v530, %v536
      %v538 = vld [vmem:[%s334] sm:$0xf]
      %vm539 = vcmask 1040384
      %v540 = vsel %vm539, %v454, %v477
      %vm541 = vcmask 1041408
      %v542 = vsel %vm541, %v540, %v500
      %vm543 = vcmask 1042432
      %v544 = vsel %vm543, %v542, %v523
      %v545 = vadd.f32 %v538, %v544
      %546 = vst [vmem:[%s334] sm:$0xf] %v545
      %v547 = vld [vmem:[%s341] sm:$0xf]
      %v548 = vsel %vm539, %v468, %v491
      %v549 = vsel %vm541, %v548, %v514
      %v550 = vsel %vm543, %v549, %v537
      %v551 = vadd.f32 %v547, %v550
      %552 = vst [vmem:[%s341] sm:$0xf] %v551
      %p553 = scmp.lt.s32.totalorder %s22, 1
      %s554 = scalar_select %p553, %s22, 1
      %p555 = scmp.lt.s32.totalorder %s23, 0
      %s556 = scalar_select %p555, %s23, 0
      %s557 = sadd.s32 %s556, %s554
      %s558 = smul.addr %s557, 4
      %s559 = scalar_lea.vmem %s2, %s558
      %p560 = scmp.lt.s32.totalorder %s22, 1
      %s561 = scalar_select %p560, %s22, 1
      %p562 = scmp.lt.s32.totalorder %s23, 0
      %s563 = scalar_select %p562, %s23, 0
      %s564 = sadd.s32 %s563, %s561
      %s565 = smul.addr %s564, 4
      %s566 = scalar_lea.vmem %s3, %s565
      %p567 = scmp.lt.s32.totalorder %s22, 1
      %s568 = scalar_select %p567, %s22, 1
      %p569 = scmp.lt.s32.totalorder %s23, 0
      %s570 = scalar_select %p569, %s23, 0
      %s571 = sadd.s32 %s570, %s568
      %s572 = scalar_lea.vmem %s4, %s571
      %p573 = scmp.lt.s32.totalorder %s22, 1
      %s574 = scalar_select %p573, %s22, 1
      %p575 = scmp.lt.s32.totalorder %s23, 0
      %s576 = scalar_select %p575, %s23, 0
      %s577 = sadd.s32 %s576, %s574
      %s578 = scalar_lea.vmem %s5, %s577
      // Predicated region
      $region33: #{combined_loss.1} parent=27 // pred_check
        %p579 = pneg %p116
      $region34: #{combined_loss.1} parent=27 // pred_check_branch
        %581 = sbr.rel (%p579) target = $region36
      $region35: #{combined_loss.1} parent=27 // pred_region
        _
      $region36: #{combined_loss.1} parent=27 // pred_fallthru
        _
      // Predicated region
      $region37: #{combined_loss.1} parent=27 // pred_check
        %p582 = pneg %p144
      $region38: #{combined_loss.1} parent=27 // pred_check_branch
        %584 = sbr.rel (%p582) target = $region40
      $region39: #{combined_loss.1} parent=27 // pred_region
        _
      $region40: #{combined_loss.1} parent=27 // pred_fallthru
        _
      // Predicated region
      $region41: #{combined_loss.1} parent=27 // pred_check
        %p585 = pneg %p172
      $region42: #{combined_loss.1} parent=27 // pred_check_branch
        %587 = sbr.rel (%p585) target = $region44
      $region43: #{combined_loss.1} parent=27 // pred_region
        _
      $region44: #{combined_loss.1} parent=27 // pred_fallthru
        _
      // Predicated region
      $region45: #{combined_loss.1} parent=27 // pred_check
        %p588 = pneg %p200
      $region46: #{combined_loss.1} parent=27 // pred_check_branch
        %590 = sbr.rel (%p588) target = $region48
      $region47: #{combined_loss.1} parent=27 // pred_region
        _
      $region48: #{combined_loss.1} parent=27 // pred_fallthru
        _
    $region28: #{combined_loss.1} parent=5 // pred_fallthru
      _
    %p591 = scmp.le.s32.totalorder 2, %s12
    // Predicated region
    $region49: #{combined_loss.1} parent=5 // pred_check
      %p592 = pneg %p591
    $region50: #{combined_loss.1} parent=5 // pred_check_branch
      %594 = sbr.rel (%p592) target = $region52
    $region51: #{combined_loss.1} parent=5 // pred_region
      %s595 = ssub.s32 %s12, 2
      // Predicated region
      $region53: #{combined_loss.1} parent=51 // pred_check
        %p596 = pneg %p122
      $region54: #{combined_loss.1} parent=51 // pred_check_branch
        %598 = sbr.rel (%p596) target = $region56
      $region55: #{combined_loss.1} parent=51 // pred_region
        %p599 = scmp.lt.s32.totalorder %s25, 1
        %s600 = scalar_select %p599, %s25, 1
        %p601 = scmp.lt.s32.totalorder %s26, 0
        %s602 = scalar_select %p601, %s26, 0
        %s603 = sadd.s32 %s602, %s600
        %s604 = smul.addr %s603, 4
        %s605 = scalar_lea.vmem %s2, %s604
      $region56: #{combined_loss.1} parent=51 // pred_fallthru
        _
      // Predicated region
      $region57: #{combined_loss.1} parent=51 // pred_check
        %p606 = pneg %p150
      $region58: #{combined_loss.1} parent=51 // pred_check_branch
        %608 = sbr.rel (%p606) target = $region60
      $region59: #{combined_loss.1} parent=51 // pred_region
        %p609 = scmp.lt.s32.totalorder %s25, 1
        %s610 = scalar_select %p609, %s25, 1
        %p611 = scmp.lt.s32.totalorder %s26, 0
        %s612 = scalar_select %p611, %s26, 0
        %s613 = sadd.s32 %s612, %s610
        %s614 = smul.addr %s613, 4
        %s615 = scalar_lea.vmem %s3, %s614
      $region60: #{combined_loss.1} parent=51 // pred_fallthru
        _
      // Predicated region
      $region61: #{combined_loss.1} parent=51 // pred_check
        %p616 = pneg %p178
      $region62: #{combined_loss.1} parent=51 // pred_check_branch
        %618 = sbr.rel (%p616) target = $region64
      $region63: #{combined_loss.1} parent=51 // pred_region
        %p619 = scmp.lt.s32.totalorder %s25, 1
        %s620 = scalar_select %p619, %s25, 1
        %p621 = scmp.lt.s32.totalorder %s26, 0
        %s622 = scalar_select %p621, %s26, 0
        %s623 = sadd.s32 %s622, %s620
        %s624 = scalar_lea.vmem %s4, %s623
      $region64: #{combined_loss.1} parent=51 // pred_fallthru
        _
      // Predicated region
      $region65: #{combined_loss.1} parent=51 // pred_check
        %p625 = pneg %p206
      $region66: #{combined_loss.1} parent=51 // pred_check_branch
        %627 = sbr.rel (%p625) target = $region68
      $region67: #{combined_loss.1} parent=51 // pred_region
        %p628 = scmp.lt.s32.totalorder %s25, 1
        %s629 = scalar_select %p628, %s25, 1
        %p630 = scmp.lt.s32.totalorder %s26, 0
        %s631 = scalar_select %p630, %s26, 0
        %s632 = sadd.s32 %s631, %s629
        %s633 = scalar_lea.vmem %s5, %s632
      $region68: #{combined_loss.1} parent=51 // pred_fallthru
        _
    $region52: #{combined_loss.1} parent=5 // pred_fallthru
      _
  $region6: #{combined_loss.1} parent=0 // loop_footer
    %s16 = sadd.s32 1, %s12
  $region7: #{combined_loss.1} parent=0 // loop_footer_branch
    %11 = sbr.rel target = $region3
  $region8: #{combined_loss.1} parent=0 // loop_exit
    _

</llo_original>
